<compile_context>
chip_gen: v7x
topology: tpu7x:2x2x1
jax: 0.10.0
libtpu: 0.0.40
codegen_flags: <defaults>
</compile_context>

<pallas_src>
from collections import OrderedDict

import jax
import jax.numpy as jnp
import numpy as np
from jax.experimental import pallas as pl
from jax.experimental.pallas import tpu as pltpu  # noqa: F401  (TPU backend)

# ------------------------- model hyper-parameters -------------------------
B, C, H, W = 2, 4, 16, 16     # input image batch (NCHW in the PyTorch API)
F_DIM = 32                    # backbone feature channels
K = 8                         # number of classes (one anchor per location)


# ------------------------------ Pallas kernel ------------------------------
def retinanet_kernel(x_ref, anc_ref, w1_ref, b1_ref, wcr_ref, out_ref):
    # Pixels on the lane axis (last dim), channels/classes on sublanes.
    #   x_ref:   (C, N)        anc_ref: (4, N)
    #   w1_ref:  (F+1, C)      b1_ref:  (F+1, 1)
    #       (row F has zero weights / bias 1.0 -> constant-1 feature row)
    #   wcr_ref: (K+4, F+1)    (class + box heads fused; bias in last column)
    #   out_ref: (6, N)        rows 0:4 boxes, row 4 score, row 5 label (f32)
    x = x_ref[...]                                                   # (C, N)
    w1 = w1_ref[...]                                                 # (F+1, C)

    # Backbone 1x1 conv on the VPU: a C=4 contraction is <2% useful MXU work,
    # so 4 broadcast FMAs avoid a second serialized MXU weight-load/fill/drain.
    feat = b1_ref[...] + w1[:, 0:1] * x[0:1, :]                      # (F+1, N)
    for c in range(1, x.shape[0]):                                   # static, C=4
        feat = feat + w1[:, c:c + 1] * x[c:c + 1, :]
    feat = jnp.maximum(feat, 0.0)                                    # ReLU; 1-row stays 1

    # Fused classification + box-regression heads (bias folded): one MXU pass.
    head = jnp.dot(wcr_ref[...], feat, preferred_element_type=jnp.float32)
    logits = head[:K, :]          # (K, N)  — K=8: sublane-tile aligned slice
    deltas = head[K:, :]          # (4, N)

    # boxes: simple additive decode vs anchors
    out_ref[0:4, :] = anc_ref[...] + deltas

    # sigmoid is strictly increasing -> reduce logits, sigmoid only the (1,N) max;
    # exp + approx reciprocal both run on the EUP slot.
    max_logit = jnp.max(logits, axis=0, keepdims=True)               # (1, N)
    out_ref[4:5, :] = pl.reciprocal(1.0 + jnp.exp(-max_logit), approx=True)

    # argmax (first index of max), stored as f32 (0..K-1 exact) to share the slab.
    cls_idx = jax.lax.broadcasted_iota(jnp.int32, logits.shape, 0).astype(jnp.float32)
    out_ref[5:6, :] = jnp.min(
        jnp.where(logits >= max_logit, cls_idx, float(K)),
        axis=0, keepdims=True)


# ------------------------- one-time parameter prep --------------------------
def prepare_detector_constants(params, anchors, batch):
    """Parameter-side layout work done ONCE at model init (not per forward)."""
    w1, b1, wc, bc, wr, br = params
    # Extend the backbone with a constant-1 feature row so the head bias folds
    # into the head matmul (its contraction dim is MXU-padded anyway).
    w1_ext = jnp.concatenate([w1.T, jnp.zeros((1, w1.shape[0]), jnp.float32)],
                             axis=0)                                  # (F+1, C)
    b1_ext = jnp.concatenate([b1.T, jnp.ones((1, 1), jnp.float32)],
                             axis=0)                                  # (F+1, 1)
    wcr = jnp.concatenate([wc, wr], axis=1).T                         # (K+4, F)
    bcr = jnp.concatenate([bc, br], axis=1).T                         # (K+4, 1)
    wcr_aug = jnp.concatenate([wcr, bcr], axis=1)                     # (K+4, F+1)
    anc_t = jnp.tile(anchors.T, (1, batch))                           # (4, batch*HW)
    return w1_ext, b1_ext, wcr_aug, anc_t


# ------------------------------ JAX wrapper --------------------------------
@jax.jit
def retinanet_detector(x_nchw, w1_ext, b1_ext, wcr_aug, anc_t):
    """x_nchw: [B, C, H, W] f32 -> (boxes [B,HW,4], labels [B,HW] i32, scores [B,HW])."""
    b, c, h, w = x_nchw.shape
    n_pix = b * h * w

    # pixels-on-lanes layout: channels -> sublanes, pixels -> lanes
    x_t = jnp.transpose(x_nchw, (1, 0, 2, 3)).reshape(c, n_pix)       # (C, N)

    # No grid: the whole problem (<0.1 MiB) is a single VMEM-resident block,
    # so there is no pipeline machinery and no buffer duplication.
    slab = pl.pallas_call(
        retinanet_kernel,
        out_shape=jax.ShapeDtypeStruct((6, n_pix), jnp.float32),
    )(x_t, anc_t, w1_ext, b1_ext, wcr_aug)

    # Split / relayout the lane-dense slab on the XLA side (cheaper than a
    # masked 4-lane store inside the kernel).
    boxes = slab[:4].reshape(4, b, h * w).transpose(1, 2, 0)          # (B, HW, 4)
    scores = slab[4].reshape(b, h * w)
    labels = slab[5].astype(jnp.int32).reshape(b, h * w)
    return boxes, labels, scores


def make_retinanet_model_output_wrapper(params, anchors):
    """Pallas equivalent of RetinaNetModelOutputWrapper(model).forward."""
    # Only image 0 is consumed by the wrapper -> prepare constants for batch=1.
    consts = prepare_detector_constants(params, anchors, batch=1)

    def forward(x_nchw):
        boxes, labels, scores = retinanet_detector(x_nchw[:1], *consts)
        d = OrderedDict()
        d['boxes'] = boxes[0]
        d['labels'] = labels[0]
        d['scores'] = scores[0]
        return [d]

    return forward


# --------------------------- pure-JAX reference -----------------------------
def reference_detector(x_nchw, params, anchors):
    b, c, h, w = x_nchw.shape
    x_rows = jnp.transpose(x_nchw, (0, 2, 3, 1)).reshape(b * h * w, c)
    w1, b1, wc, bc, wr, br = params
    feat = jnp.maximum(x_rows @ w1 + b1, 0.0)
    logits = feat @ wc + bc
    deltas = feat @ wr + br
    anc = jnp.broadcast_to(anchors[None], (b, h * w, 4)).reshape(b * h * w, 4)
    boxes = (anc + deltas).reshape(b, h * w, 4)
    probs = jax.nn.sigmoid(logits)
    scores = probs.max(-1).reshape(b, h * w)
    labels = probs.argmax(-1).astype(jnp.int32).reshape(b, h * w)
    return boxes, labels, scores


# ------------------------- deterministic parameters -------------------------
def init_params(key):
    k1, k2, k3, k4, k5, k6 = jax.random.split(key, 6)
    w1 = jax.random.normal(k1, (C, F_DIM), jnp.float32) * 0.1
    b1 = jax.random.normal(k2, (1, F_DIM), jnp.float32) * 0.01
    wc = jax.random.normal(k3, (F_DIM, K), jnp.float32) * 0.1
    bc = jax.random.normal(k4, (1, K), jnp.float32) * 0.01
    wr = jax.random.normal(k5, (F_DIM, 4), jnp.float32) * 0.1
    br = jax.random.normal(k6, (1, 4), jnp.float32) * 0.01
    return (w1, b1, wc, bc, wr, br)


def make_anchors(h, w):
    ys = jnp.arange(h, dtype=jnp.float32)
    xs = jnp.arange(w, dtype=jnp.float32)
    yy, xx = jnp.meshgrid(ys, xs, indexing="ij")
    # one unit-sized anchor per location: [x1, y1, x2, y2]
    return jnp.stack([xx, yy, xx + 1.0, yy + 1.0], axis=-1).reshape(h * w, 4)


if __name__ == "__main__":
    key = jax.random.PRNGKey(0)
    kx, kp = jax.random.split(key)
    x = jax.random.normal(kx, (B, C, H, W), jnp.float32)
    params = init_params(kp)
    anchors = make_anchors(H, W)

    forward = make_retinanet_model_output_wrapper(params, anchors)
    out = forward(x)
    jax.block_until_ready((out[0]['boxes'], out[0]['labels'], out[0]['scores']))

    # shape / dtype checks (match the PyTorch wrapper's contract)
    assert out[0]['boxes'].shape == (H * W, 4)
    assert out[0]['labels'].shape == (H * W,)
    assert out[0]['scores'].shape == (H * W,)
    assert out[0]['labels'].dtype == jnp.int32

    # loose numeric check vs pure-JAX reference (MXU f32 pass / approx-recip)
    rb, rl, rs = reference_detector(x[:1], params, anchors)
    np.testing.assert_allclose(np.asarray(out[0]['boxes']), np.asarray(rb[0]),
                               rtol=2e-2, atol=2e-2)
    np.testing.assert_allclose(np.asarray(out[0]['scores']), np.asarray(rs[0]),
                               rtol=2e-2, atol=2e-2)

    print("KERNEL_OK")
</pallas_src>

<mosaic_0001>
module attributes {stable_mosaic.version = 11 : i64} {
  func.func @retinanet_kernel(%arg0: memref<4x256xf32, #tpu.memory_space<vmem>>, %arg1: memref<4x256xf32, #tpu.memory_space<vmem>>, %arg2: memref<33x4xf32, #tpu.memory_space<vmem>>, %arg3: memref<33x1xf32, #tpu.memory_space<vmem>>, %arg4: memref<12x33xf32, #tpu.memory_space<vmem>>, %arg5: memref<6x256xf32, #tpu.memory_space<vmem>>) attributes {dimension_semantics = [], scalar_prefetch = 0 : i64, scratch_operands = 0 : i64, tpu.core_type = #tpu.core_type<tc>} {
    %c0 = arith.constant 0 : index
    %c0_0 = arith.constant 0 : index
    %0 = vector.load %arg0[%c0, %c0_0] : memref<4x256xf32, #tpu.memory_space<vmem>>, vector<4x256xf32>
    %c0_1 = arith.constant 0 : index
    %c0_2 = arith.constant 0 : index
    %1 = vector.load %arg2[%c0_1, %c0_2] : memref<33x4xf32, #tpu.memory_space<vmem>>, vector<33x4xf32>
    %c0_3 = arith.constant 0 : index
    %c0_4 = arith.constant 0 : index
    %2 = vector.load %arg3[%c0_3, %c0_4] : memref<33x1xf32, #tpu.memory_space<vmem>>, vector<33x1xf32>
    %3 = vector.extract_strided_slice %1 {offsets = [0, 0], sizes = [33, 1], strides = [1, 1]} : vector<33x4xf32> to vector<33x1xf32>
    %4 = vector.extract_strided_slice %0 {offsets = [0, 0], sizes = [1, 256], strides = [1, 1]} : vector<4x256xf32> to vector<1x256xf32>
    %5 = vector.broadcast %3 : vector<33x1xf32> to vector<33x256xf32>
    %6 = vector.broadcast %4 : vector<1x256xf32> to vector<33x256xf32>
    %7 = arith.mulf %5, %6 : vector<33x256xf32>
    %8 = vector.broadcast %2 : vector<33x1xf32> to vector<33x256xf32>
    %9 = arith.addf %8, %7 : vector<33x256xf32>
    %10 = vector.extract_strided_slice %1 {offsets = [0, 1], sizes = [33, 1], strides = [1, 1]} : vector<33x4xf32> to vector<33x1xf32>
    %11 = vector.extract_strided_slice %0 {offsets = [1, 0], sizes = [1, 256], strides = [1, 1]} : vector<4x256xf32> to vector<1x256xf32>
    %12 = vector.broadcast %10 : vector<33x1xf32> to vector<33x256xf32>
    %13 = vector.broadcast %11 : vector<1x256xf32> to vector<33x256xf32>
    %14 = arith.mulf %12, %13 : vector<33x256xf32>
    %15 = arith.addf %9, %14 : vector<33x256xf32>
    %16 = vector.extract_strided_slice %1 {offsets = [0, 2], sizes = [33, 1], strides = [1, 1]} : vector<33x4xf32> to vector<33x1xf32>
    %17 = vector.extract_strided_slice %0 {offsets = [2, 0], sizes = [1, 256], strides = [1, 1]} : vector<4x256xf32> to vector<1x256xf32>
    %18 = vector.broadcast %16 : vector<33x1xf32> to vector<33x256xf32>
    %19 = vector.broadcast %17 : vector<1x256xf32> to vector<33x256xf32>
    %20 = arith.mulf %18, %19 : vector<33x256xf32>
    %21 = arith.addf %15, %20 : vector<33x256xf32>
    %22 = vector.extract_strided_slice %1 {offsets = [0, 3], sizes = [33, 1], strides = [1, 1]} : vector<33x4xf32> to vector<33x1xf32>
    %23 = vector.extract_strided_slice %0 {offsets = [3, 0], sizes = [1, 256], strides = [1, 1]} : vector<4x256xf32> to vector<1x256xf32>
    %24 = vector.broadcast %22 : vector<33x1xf32> to vector<33x256xf32>
    %25 = vector.broadcast %23 : vector<1x256xf32> to vector<33x256xf32>
    %26 = arith.mulf %24, %25 : vector<33x256xf32>
    %27 = arith.addf %21, %26 : vector<33x256xf32>
    %cst = arith.constant 0.000000e+00 : f32
    %28 = vector.broadcast %cst : f32 to vector<33x256xf32>
    %29 = arith.maximumf %27, %28 : vector<33x256xf32>
    %c0_5 = arith.constant 0 : index
    %c0_6 = arith.constant 0 : index
    %30 = vector.load %arg4[%c0_5, %c0_6] : memref<12x33xf32, #tpu.memory_space<vmem>>, vector<12x33xf32>
    %cst_7 = arith.constant dense<0.000000e+00> : vector<12x256xf32>
    %31 = tpu.matmul %30, %29, %cst_7 {dimension_numbers = #tpu.dot_dimension_numbers<[1], [0], [0], [1], [0, 0, 1, 1], [], []>} : vector<12x33xf32>, vector<33x256xf32>, vector<12x256xf32> -> vector<12x256xf32>
    %32 = vector.extract_strided_slice %31 {offsets = [0, 0], sizes = [8, 256], strides = [1, 1]} : vector<12x256xf32> to vector<8x256xf32>
    %33 = vector.extract_strided_slice %31 {offsets = [8, 0], sizes = [4, 256], strides = [1, 1]} : vector<12x256xf32> to vector<4x256xf32>
    %c0_8 = arith.constant 0 : index
    %c0_9 = arith.constant 0 : index
    %34 = vector.load %arg1[%c0_8, %c0_9] : memref<4x256xf32, #tpu.memory_space<vmem>>, vector<4x256xf32>
    %35 = arith.addf %34, %33 : vector<4x256xf32>
    %c0_10 = arith.constant 0 : index
    %c0_11 = arith.constant 0 : index
    %36 = vector.load %arg5[%c0_10, %c0_11] : memref<6x256xf32, #tpu.memory_space<vmem>>, vector<4x256xf32>
    tpu.vector_store %arg5[%c0_10, %c0_11], %35 {strides = array<i32>} : memref<6x256xf32, #tpu.memory_space<vmem>>, vector<4x256xf32>,
    %cst_12 = arith.constant dense<0xFF800000> : vector<256xf32>
    %37 = vector.multi_reduction <maximumf>, %32, %cst_12 [0] : vector<8x256xf32> to vector<256xf32>
    %38 = vector.shape_cast %37 : vector<256xf32> to vector<1x256xf32>
    %cst_13 = arith.constant 0.000000e+00 : f32
    %39 = vector.broadcast %cst_13 : f32 to vector<1x256xf32>
    %40 = arith.subf %39, %38 : vector<1x256xf32>
    %41 = math.exp %40 : vector<1x256xf32>
    %cst_14 = arith.constant 1.000000e+00 : f32
    %42 = vector.broadcast %cst_14 : f32 to vector<1x256xf32>
    %43 = arith.addf %42, %41 : vector<1x256xf32>
    %44 = tpu.reciprocal %43 {approx = true} : vector<1x256xf32> -> vector<1x256xf32>
    %c4 = arith.constant 4 : index
    %c0_15 = arith.constant 0 : index
    %45 = vector.load %arg5[%c4, %c0_15] : memref<6x256xf32, #tpu.memory_space<vmem>>, vector<1x256xf32>
    tpu.vector_store %arg5[%c4, %c0_15], %44 {strides = array<i32>} : memref<6x256xf32, #tpu.memory_space<vmem>>, vector<1x256xf32>,
    %46 = tpu.iota {dimensions = array<i32: 0>} : vector<8x256xi32>
    %47 = arith.sitofp %46 : vector<8x256xi32> to vector<8x256xf32>
    %48 = vector.broadcast %38 : vector<1x256xf32> to vector<8x256xf32>
    %49 = arith.cmpf oge, %32, %48 : vector<8x256xf32>
    %cst_16 = arith.constant 8.000000e+00 : f32
    %50 = vector.broadcast %cst_16 : f32 to vector<8x256xf32>
    %51 = arith.select %49, %47, %50 : vector<8x256xi1>, vector<8x256xf32>
    %cst_17 = arith.constant dense<0x7F800000> : vector<256xf32>
    %52 = vector.multi_reduction <minimumf>, %51, %cst_17 [0] : vector<8x256xf32> to vector<256xf32>
    %53 = vector.shape_cast %52 : vector<256xf32> to vector<1x256xf32>
    %c5 = arith.constant 5 : index
    %c0_18 = arith.constant 0 : index
    %54 = vector.load %arg5[%c5, %c0_18] : memref<6x256xf32, #tpu.memory_space<vmem>>, vector<1x256xf32>
    tpu.vector_store %arg5[%c5, %c0_18], %53 {strides = array<i32>} : memref<6x256xf32, #tpu.memory_space<vmem>>, vector<1x256xf32>,
    return
  }
}

</mosaic_0001>

<llo_original>
// kernel: retinanet_detector.1
$region0: #{retinanet_detector.1}
  #allocation0 [shape = 'u32[]', space=smem, size = 0x4, offset = 0x4, fixed_abs, tag = 'smem constant byte address 0x4 - core index']
  #allocation1 [shape = 'u32[144,128]{1,0:T(1,128)}', space=vmem, size = 0x12000, scoped, tag = 'internal scratch']
  %s0 = inlined_call_operand.vmem [shape: f32[4,256], index: 0, kind: input, shape index: {}]
  %s1 = inlined_call_operand.vmem [shape: f32[4,256], index: 1, kind: input, shape index: {}]
  %s2 = inlined_call_operand.vmem [shape: f32[33,4], index: 2, kind: input, shape index: {}]
  %s3 = inlined_call_operand.vmem [shape: f32[33,1], index: 3, kind: input, shape index: {}]
  %s4 = inlined_call_operand.vmem [shape: f32[12,33], index: 4, kind: input, shape index: {}]
  %s5 = inlined_call_operand.vmem [shape: f32[6,256], index: 5, kind: output, shape index: {}]
  %s6 = sld [smem:[#allocation0]]
  $region30: #{retinanet_detector.1} parent=0
    _
  %s8 = ssub.s32 1, %s6
  %s9 = scalar_select 0, %s8, %s6
  // Predicated region
  $region2: #{retinanet_detector.1} parent=0 // pred_check
    _
  $region3: #{retinanet_detector.1} parent=0 // pred_check_branch
    %11 = sbr.rel (0) target = $region5
  $region4: #{retinanet_detector.1} parent=0 // pred_region
    _
  $region5: #{retinanet_detector.1} parent=0 // pred_fallthru
    _
  // Predicated region
  $region6: #{retinanet_detector.1} parent=0 // pred_check
    _
  $region7: #{retinanet_detector.1} parent=0 // pred_check_branch
    %13 = sbr.rel (0) target = $region9
  $region8: #{retinanet_detector.1} parent=0 // pred_region
    _
  $region9: #{retinanet_detector.1} parent=0 // pred_fallthru
    _
  // Predicated region
  $region10: #{retinanet_detector.1} parent=0 // pred_check
    _
  $region11: #{retinanet_detector.1} parent=0 // pred_check_branch
    %15 = sbr.rel (0) target = $region13
  $region12: #{retinanet_detector.1} parent=0 // pred_region
    _
  $region13: #{retinanet_detector.1} parent=0 // pred_fallthru
    _
  // Predicated region
  $region14: #{retinanet_detector.1} parent=0 // pred_check
    _
  $region15: #{retinanet_detector.1} parent=0 // pred_check_branch
    %17 = sbr.rel (0) target = $region17
  $region16: #{retinanet_detector.1} parent=0 // pred_region
    _
  $region17: #{retinanet_detector.1} parent=0 // pred_fallthru
    _
  // Predicated region
  $region18: #{retinanet_detector.1} parent=0 // pred_check
    _
  $region19: #{retinanet_detector.1} parent=0 // pred_check_branch
    %19 = sbr.rel (0) target = $region21
  $region20: #{retinanet_detector.1} parent=0 // pred_region
    _
  $region21: #{retinanet_detector.1} parent=0 // pred_fallthru
    _
  %v20 = vld [vmem:[%s0] sm:$0xff]
  %v21 = vld [vmem:[%s2] sm:$0xff]
  %v22 = vld [vmem:[%s2 + $0x8] sm:$0xff]
  %v23 = vld [vmem:[%s2 + $0x10] sm:$0xff]
  %v24 = vld [vmem:[%s2 + $0x18] sm:$0xff]
  %v25 = vld [vmem:[%s2 + $0x20] sm:$0x1]
  %v26 = vld [vmem:[%s3] sm:$0xff]
  %v27 = vld [vmem:[%s3 + $0x8] sm:$0xff]
  %v28 = vld [vmem:[%s3 + $0x10] sm:$0xff]
  %v29 = vld [vmem:[%s3 + $0x18] sm:$0xff]
  %v30 = vld [vmem:[%s3 + $0x20] sm:$0x1]
  %32 = vset.pattern.permute.xlu0 0
  %33 = vperm.xlu0 %32, %v21
  %v34 = vpop.permute.xlu0 %33
  %37 = vset.pattern.permute.xlu0 0
  %38 = vperm.xlu0 %37, %v22
  %v39 = vpop.permute.xlu0 %38
  %42 = vset.pattern.permute.xlu0 0
  %43 = vperm.xlu0 %42, %v23
  %v44 = vpop.permute.xlu0 %43
  %47 = vset.pattern.permute.xlu0 0
  %48 = vperm.xlu0 %47, %v24
  %v49 = vpop.permute.xlu0 %48
  %52 = vset.pattern.permute.xlu0 0
  %53 = vperm.xlu0 %52, %v25
  %v54 = vpop.permute.xlu0 %53
  %v57 = vlaneseq
  %v58 = vshrl.u32 %v57, 7
  %v59 = vsub.s32 0, %v58
  %v60 = vrot.slane %v20, %v59
  %v61 = vlaneseq
  %v62 = vshrl.u32 %v61, 7
  %v63 = vsub.s32 4, %v62
  %v64 = vrot.slane %v20, %v63
  %v67 = vlaneseq
  %v68 = vshrl.u32 %v67, 7
  %v69 = vsub.s32 0, %v68
  %v70 = vrot.slane %v60, %v69
  %v71 = vlaneseq
  %v72 = vshrl.u32 %v71, 7
  %v73 = vsub.s32 0, %v72
  %v74 = vrot.slane %v64, %v73
  %v75 = vmul.f32 %v34, %v70
  %v76 = vmul.f32 %v34, %v74
  %v77 = vmul.f32 %v39, %v70
  %v78 = vmul.f32 %v39, %v74
  %v79 = vmul.f32 %v44, %v70
  %v80 = vmul.f32 %v44, %v74
  %v81 = vmul.f32 %v49, %v70
  %v82 = vmul.f32 %v49, %v74
  %v83 = vmul.f32 %v54, %v70
  %v84 = vmul.f32 %v54, %v74
  %86 = vset.pattern.permute.xlu0 0
  %87 = vperm.xlu0 %86, %v26
  %v88 = vpop.permute.xlu0 %87
  %91 = vset.pattern.permute.xlu0 0
  %92 = vperm.xlu0 %91, %v27
  %v93 = vpop.permute.xlu0 %92
  %96 = vset.pattern.permute.xlu0 0
  %97 = vperm.xlu0 %96, %v28
  %v98 = vpop.permute.xlu0 %97
  %101 = vset.pattern.permute.xlu0 0
  %102 = vperm.xlu0 %101, %v29
  %v103 = vpop.permute.xlu0 %102
  %106 = vset.pattern.permute.xlu0 0
  %107 = vperm.xlu0 %106, %v30
  %v108 = vpop.permute.xlu0 %107
  %v110 = vadd.f32 %v88, %v75
  %v111 = vadd.f32 %v88, %v76
  %v112 = vadd.f32 %v93, %v77
  %v113 = vadd.f32 %v93, %v78
  %v114 = vadd.f32 %v98, %v79
  %v115 = vadd.f32 %v98, %v80
  %v116 = vadd.f32 %v103, %v81
  %v117 = vadd.f32 %v103, %v82
  %v118 = vadd.f32 %v108, %v83
  %v119 = vadd.f32 %v108, %v84
  %120 = vset.pattern.permute.xlu0 1
  %121 = vperm.xlu0 %120, %v21
  %v122 = vpop.permute.xlu0 %121
  %124 = vset.pattern.permute.xlu0 1
  %125 = vperm.xlu0 %124, %v22
  %v126 = vpop.permute.xlu0 %125
  %128 = vset.pattern.permute.xlu0 1
  %129 = vperm.xlu0 %128, %v23
  %v130 = vpop.permute.xlu0 %129
  %132 = vset.pattern.permute.xlu0 1
  %133 = vperm.xlu0 %132, %v24
  %v134 = vpop.permute.xlu0 %133
  %136 = vset.pattern.permute.xlu0 1
  %137 = vperm.xlu0 %136, %v25
  %v138 = vpop.permute.xlu0 %137
  %v140 = vlaneseq
  %v141 = vshrl.u32 %v140, 7
  %v142 = vsub.s32 1, %v141
  %v143 = vrot.slane %v20, %v142
  %v144 = vlaneseq
  %v145 = vshrl.u32 %v144, 7
  %v146 = vsub.s32 5, %v145
  %v147 = vrot.slane %v20, %v146
  %v150 = vlaneseq
  %v151 = vshrl.u32 %v150, 7
  %v152 = vsub.s32 1, %v151
  %v153 = vrot.slane %v143, %v152
  %v154 = vlaneseq
  %v155 = vshrl.u32 %v154, 7
  %v156 = vsub.s32 1, %v155
  %v157 = vrot.slane %v147, %v156
  %v158 = vmul.f32 %v122, %v153
  %v159 = vmul.f32 %v122, %v157
  %v160 = vmul.f32 %v126, %v153
  %v161 = vmul.f32 %v126, %v157
  %v162 = vmul.f32 %v130, %v153
  %v163 = vmul.f32 %v130, %v157
  %v164 = vmul.f32 %v134, %v153
  %v165 = vmul.f32 %v134, %v157
  %v166 = vmul.f32 %v138, %v153
  %v167 = vmul.f32 %v138, %v157
  %v168 = vadd.f32 %v110, %v158
  %v169 = vadd.f32 %v111, %v159
  %v170 = vadd.f32 %v112, %v160
  %v171 = vadd.f32 %v113, %v161
  %v172 = vadd.f32 %v114, %v162
  %v173 = vadd.f32 %v115, %v163
  %v174 = vadd.f32 %v116, %v164
  %v175 = vadd.f32 %v117, %v165
  %v176 = vadd.f32 %v118, %v166
  %v177 = vadd.f32 %v119, %v167
  %178 = vset.pattern.permute.xlu0 2
  %179 = vperm.xlu0 %178, %v21
  %v180 = vpop.permute.xlu0 %179
  %182 = vset.pattern.permute.xlu0 2
  %183 = vperm.xlu0 %182, %v22
  %v184 = vpop.permute.xlu0 %183
  %186 = vset.pattern.permute.xlu0 2
  %187 = vperm.xlu0 %186, %v23
  %v188 = vpop.permute.xlu0 %187
  %190 = vset.pattern.permute.xlu0 2
  %191 = vperm.xlu0 %190, %v24
  %v192 = vpop.permute.xlu0 %191
  %194 = vset.pattern.permute.xlu0 2
  %195 = vperm.xlu0 %194, %v25
  %v196 = vpop.permute.xlu0 %195
  %v198 = vlaneseq
  %v199 = vshrl.u32 %v198, 7
  %v200 = vsub.s32 2, %v199
  %v201 = vrot.slane %v20, %v200
  %v202 = vlaneseq
  %v203 = vshrl.u32 %v202, 7
  %v204 = vsub.s32 6, %v203
  %v205 = vrot.slane %v20, %v204
  %v208 = vlaneseq
  %v209 = vshrl.u32 %v208, 7
  %v210 = vsub.s32 2, %v209
  %v211 = vrot.slane %v201, %v210
  %v212 = vlaneseq
  %v213 = vshrl.u32 %v212, 7
  %v214 = vsub.s32 2, %v213
  %v215 = vrot.slane %v205, %v214
  %v216 = vmul.f32 %v180, %v211
  %v217 = vmul.f32 %v180, %v215
  %v218 = vmul.f32 %v184, %v211
  %v219 = vmul.f32 %v184, %v215
  %v220 = vmul.f32 %v188, %v211
  %v221 = vmul.f32 %v188, %v215
  %v222 = vmul.f32 %v192, %v211
  %v223 = vmul.f32 %v192, %v215
  %v224 = vmul.f32 %v196, %v211
  %v225 = vmul.f32 %v196, %v215
  %v226 = vadd.f32 %v168, %v216
  %v227 = vadd.f32 %v169, %v217
  %v228 = vadd.f32 %v170, %v218
  %v229 = vadd.f32 %v171, %v219
  %v230 = vadd.f32 %v172, %v220
  %v231 = vadd.f32 %v173, %v221
  %v232 = vadd.f32 %v174, %v222
  %v233 = vadd.f32 %v175, %v223
  %v234 = vadd.f32 %v176, %v224
  %v235 = vadd.f32 %v177, %v225
  %236 = vset.pattern.permute.xlu0 3
  %237 = vperm.xlu0 %236, %v21
  %v238 = vpop.permute.xlu0 %237
  %240 = vset.pattern.permute.xlu0 3
  %241 = vperm.xlu0 %240, %v22
  %v242 = vpop.permute.xlu0 %241
  %244 = vset.pattern.permute.xlu0 3
  %245 = vperm.xlu0 %244, %v23
  %v246 = vpop.permute.xlu0 %245
  %248 = vset.pattern.permute.xlu0 3
  %249 = vperm.xlu0 %248, %v24
  %v250 = vpop.permute.xlu0 %249
  %252 = vset.pattern.permute.xlu0 3
  %253 = vperm.xlu0 %252, %v25
  %v254 = vpop.permute.xlu0 %253
  %v256 = vlaneseq
  %v257 = vshrl.u32 %v256, 7
  %v258 = vsub.s32 3, %v257
  %v259 = vrot.slane %v20, %v258
  %v260 = vlaneseq
  %v261 = vshrl.u32 %v260, 7
  %v262 = vsub.s32 7, %v261
  %v263 = vrot.slane %v20, %v262
  %v266 = vlaneseq
  %v267 = vshrl.u32 %v266, 7
  %v268 = vsub.s32 3, %v267
  %v269 = vrot.slane %v259, %v268
  %v270 = vlaneseq
  %v271 = vshrl.u32 %v270, 7
  %v272 = vsub.s32 3, %v271
  %v273 = vrot.slane %v263, %v272
  %v274 = vmul.f32 %v238, %v269
  %v275 = vmul.f32 %v238, %v273
  %v276 = vmul.f32 %v242, %v269
  %v277 = vmul.f32 %v242, %v273
  %v278 = vmul.f32 %v246, %v269
  %v279 = vmul.f32 %v246, %v273
  %v280 = vmul.f32 %v250, %v269
  %v281 = vmul.f32 %v250, %v273
  %v282 = vmul.f32 %v254, %v269
  %v283 = vmul.f32 %v254, %v273
  %v284 = vadd.f32 %v226, %v274
  %v285 = vadd.f32 %v227, %v275
  %v286 = vadd.f32 %v228, %v276
  %v287 = vadd.f32 %v229, %v277
  %v288 = vadd.f32 %v230, %v278
  %v289 = vadd.f32 %v231, %v279
  %v290 = vadd.f32 %v232, %v280
  %v291 = vadd.f32 %v233, %v281
  %v292 = vadd.f32 %v234, %v282
  %v293 = vadd.f32 %v235, %v283
  %v294 = vmax.f32 %v284, 0.0
  %v295 = vmax.f32 %v285, 0.0
  %v296 = vmax.f32 %v286, 0.0
  %v297 = vmax.f32 %v287, 0.0
  %v298 = vmax.f32 %v288, 0.0
  %v299 = vmax.f32 %v289, 0.0
  %v300 = vmax.f32 %v290, 0.0
  %v301 = vmax.f32 %v291, 0.0
  %v302 = vmax.f32 %v292, 0.0
  %v303 = vmax.f32 %v293, 0.0
  %v304 = vld [vmem:[%s4] sm:$0xff]
  %v305 = vld [vmem:[%s4 + $0x8] sm:$0xf]
  %vm306 = vcmask 269312
  %v308 = vsel %vm306, %v304, 0
  %v311 = vsel %vm306, %v305, 0
  %vm313 = vcmask 1040384
  %v315 = vsel %vm313, %v302, 0
  %v318 = vsel %vm313, %v303, 0
  %320 = vmatprep.subr.mxu0 %v295
  %321 = vmatpush1.msra.mxu0 %v294
  %322 = vmatprep.subr.mxu0 %v297
  %323 = vmatpush1.msra.mxu0 %v296
  %324 = vmatprep.subr.mxu0 %v299
  %325 = vmatpush1.msra.mxu0 %v298
  %326 = vmatprep.subr.mxu0 %v301
  %327 = vmatpush1.msra.mxu0 %v300
  %328 = vmatprep.subr.mxu0 %v318
  %329 = vmatpush1.msra.mxu0 %v315
  %330 = vmatprep.subr.mxu0 0.0
  %331 = vmatpush1.msra.mxu0 0.0
  %332 = vmatprep.subr.mxu0 0.0
  %333 = vmatpush1.msra.mxu0 0.0
  %334 = vmatprep.subr.mxu0 0.0
  %335 = vmatpush1.msra.mxu0 0.0
  %336 = vmatprep.subr.mxu0 0.0
  %337 = vmatpush1.msra.mxu0 0.0
  %338 = vmatprep.subr.mxu0 0.0
  %339 = vmatpush1.msra.mxu0 0.0
  %340 = vmatprep.subr.mxu0 0.0
  %341 = vmatpush1.msra.mxu0 0.0
  %342 = vmatprep.subr.mxu0 0.0
  %343 = vmatpush1.msra.mxu0 0.0
  %344 = vmatprep.subr.mxu0 0.0
  %345 = vmatpush1.msra.mxu0 0.0
  %346 = vmatprep.subr.mxu0 0.0
  %347 = vmatpush1.msra.mxu0 0.0
  %348 = vmatprep.subr.mxu0 0.0
  %349 = vmatpush1.msra.mxu0 0.0
  %350 = vmatprep.subr.mxu0 0.0
  %351 = vmatpush1.msra.mxu0 0.0
  %352 = vmatprep.subr.mxu0 0.0
  %353 = vmatpush1.msra.mxu0 0.0
  %354 = vmatprep.subr.mxu0 0.0
  %355 = vmatpush1.msra.mxu0 0.0
  %356 = vmatprep.subr.mxu0 0.0
  %357 = vmatpush1.msra.mxu0 0.0
  %358 = vmatprep.subr.mxu0 0.0
  %359 = vmatpush1.msra.mxu0 0.0
  %360 = vmatprep.subr.mxu0 0.0
  %361 = vmatpush1.msra.mxu0 0.0
  %362 = vmatprep.subr.mxu0 0.0
  %363 = vmatpush1.msra.mxu0 0.0
  %364 = vmatprep.subr.mxu0 0.0
  %365 = vmatpush1.msra.mxu0 0.0
  %366 = vmatprep.subr.mxu0 0.0
  %367 = vmatpush1.msra.mxu0 0.0
  %368 = vmatprep.subr.mxu0 0.0
  %369 = vmatpush1.msra.mxu0 0.0
  %370 = vmatprep.subr.mxu0 0.0
  %371 = vmatpush1.msra.mxu0 0.0
  %372 = vmatprep.subr.mxu0 0.0
  %373 = vmatpush1.msra.mxu0 0.0
  %374 = vmatprep.subr.mxu0 0.0
  %375 = vmatpush1.msra.mxu0 0.0
  %376 = vmatprep.subr.mxu0 0.0
  %377 = vmatpush1.msra.mxu0 0.0
  %378 = vmatprep.subr.mxu0 0.0
  %379 = vmatpush1.msra.mxu0 0.0
  %380 = vmatprep.subr.mxu0 0.0
  %381 = vmatpush1.msra.mxu0 0.0
  %382 = vmatprep.subr.mxu0 0.0
  %383 = vmatpush1.msra.mxu0 0.0
  %384 = vmatprep.mubr.f32.mxu0 0.0
  %385 = vmatmul.mubr.f32.gmra.mrb[0].mxu0 %v308
  %v386 = vpop.f32.mrb[0].mxu0
  %v387 = vadd.f32 0.0, %v386
  %v388 = vpop.f32.mrb[0].mxu0
  %v389 = vadd.f32 0.0, %v388
  %390 = vmatprep.mubr.f32.mxu0 0.0
  %391 = vmatmul.mubr.f32.gmra.mrb[0].mxu0 %v311
  %v392 = vpop.f32.mrb[0].mxu0
  %v393 = vadd.f32 0.0, %v392
  %v394 = vpop.f32.mrb[0].mxu0
  %v395 = vadd.f32 0.0, %v394
  %396 = vdwg.mxu0
  %v397 = vld [vmem:[%s1] sm:$0xff]
  %v400 = vcombine.low %v393, %v395
  %v402 = vadd.f32 %v397, %v400
  %v404 = vcombine.high %v402, %v402
  %406 = vst [vmem:[%s5] sm:$0xf] %v402
  %407 = vst [vmem:[%s5 + $0x8] sm:$0xf] %v404
  %v408 = vrot.slane %v387, 4
  %v409 = vmax.f32 %v387, %v408
  %v410 = vrot.slane %v409, 2
  %v411 = vmax.f32 %v409, %v410
  %v412 = vrot.slane %v411, 1
  %v413 = vmax.f32 %v411, %v412
  %v414 = vrot.slane %v389, 4
  %v415 = vmax.f32 %v389, %v414
  %v416 = vrot.slane %v415, 2
  %v417 = vmax.f32 %v415, %v416
  %v418 = vrot.slane %v417, 1
  %v419 = vmax.f32 %v417, %v418
  %v420 = vsub.f32 0.0, %v413
  %v421 = vsub.f32 0.0, %v419
  %v422 = vmul.f32 %v420, 1.442695
  %v423 = vpow.pop %v422
  %v424 = vmul.f32 %v421, 1.442695
  %v425 = vpow.pop %v424
  %v426 = vadd.f32 %v423, 1.0
  %v427 = vadd.f32 %v425, 1.0
  %v428 = vrcp.pop %v426
  %v429 = vrcp.pop %v427
  %v432 = vcombine.low %v428, %v429
  %v434 = vunpack.c.l.s4 1966171168
  %v435 = vunpack.c.0.s8 %v434
  %v436 = vlaneseq
  %v437 = vshrl.u32 %v436, 7
  %v438 = vsub.s32 %v435, %v437
  %v439 = vrot.slane %v432, %v438
  %v441 = vunpack.c.l.s4 1966171168
  %v442 = vunpack.c.0.s8 %v441
  %v443 = vlaneseq
  %v444 = vshrl.u32 %v443, 7
  %v445 = vsub.s32 %v442, %v444
  %v446 = vrot.slane %v439, %v445
  %v448 = vlaneseq
  %vm449 = vcmp.ge.s32.totalorder %v448, 0
  %vm450 = vcmp.lt.s32.totalorder %v448, 256
  %vm451 = vmand %vm449, %vm450
  %s452 = scalar_lea.vmem %s5, 4
  %453 = vst.msk [vmem:[%s452] ss:$8 sm:$0x3] %vm451, %v446
  %454 = vst.msk [vmem:[%s452] ss:$8 sm:$0x0] %vm451, %v446
  %v455 = vlaneseq
  %v456 = vshrl.u32 %v455, 7
  %v457 = vcvt.s32.f32 %v456
  %vm458 = vcmp.ge.f32.partialorder %v387, %v413
  %vm459 = vcmp.ge.f32.partialorder %v389, %v419
  %v460 = vsel %vm458, %v457, 8.0
  %v461 = vsel %vm459, %v457, 8.0
  %v462 = vrot.slane %v460, 4
  %v463 = vmin.f32 %v460, %v462
  %v464 = vrot.slane %v463, 2
  %v465 = vmin.f32 %v463, %v464
  %v466 = vrot.slane %v465, 1
  %v467 = vmin.f32 %v465, %v466
  %v468 = vrot.slane %v461, 4
  %v469 = vmin.f32 %v461, %v468
  %v470 = vrot.slane %v469, 2
  %v471 = vmin.f32 %v469, %v470
  %v472 = vrot.slane %v471, 1
  %v473 = vmin.f32 %v471, %v472
  %v476 = vcombine.low %v467, %v473
  %v478 = vunpack.c.l.s4 1966171168
  %v479 = vunpack.c.0.s8 %v478
  %v480 = vlaneseq
  %v481 = vshrl.u32 %v480, 7
  %v482 = vsub.s32 %v479, %v481
  %v483 = vrot.slane %v476, %v482
  %v485 = vunpack.c.l.s4 1966171168
  %v486 = vunpack.c.0.s8 %v485
  %v487 = vlaneseq
  %v488 = vshrl.u32 %v487, 7
  %v489 = vsub.s32 %v486, %v488
  %v490 = vrot.slane %v483, %v489
  %s492 = scalar_lea.vmem %s5, 5
  %493 = vst.msk [vmem:[%s492] ss:$8 sm:$0x3] %vm451, %v490
  %494 = vst.msk [vmem:[%s492] ss:$8 sm:$0x0] %vm451, %v490
  // Predicated region
  $region22: #{retinanet_detector.1} parent=0 // pred_check
    _
  $region23: #{retinanet_detector.1} parent=0 // pred_check_branch
    %496 = sbr.rel (0) target = $region25
  $region24: #{retinanet_detector.1} parent=0 // pred_region
    _
  $region25: #{retinanet_detector.1} parent=0 // pred_fallthru
    _
  // Predicated region
  $region26: #{retinanet_detector.1} parent=0 // pred_check
    _
  $region27: #{retinanet_detector.1} parent=0 // pred_check_branch
    %498 = sbr.rel (0) target = $region29
  $region28: #{retinanet_detector.1} parent=0 // pred_region
    _
  $region29: #{retinanet_detector.1} parent=0 // pred_fallthru
    _

</llo_original>
